<compile_context>
chip_gen: v6e
topology: v6e:2x2x1
jax: 0.10.0
libtpu: 0.0.40
codegen_flags: <defaults>
</compile_context>

<pallas_src>
import functools

import jax
import jax.numpy as jnp
from jax import lax
from jax.experimental import pallas as pl
from jax.experimental.pallas import tpu as pltpu


def _attention_kernel(xp_ref, xc_ref, wq_ref, wk_ref, o_ref, k_ref,
                      *, n_cub, n_cub_pad):
    """One grid step: one batch element x one N_per tile.

    xp_ref : (pb, C)          x_per tile, point-major (wrapper-transposed)
    xc_ref : (C, Ncp)         full (lane-padded) cuboid slab for this batch
    wq_ref : (C, A)           W_Q^T, pre-scaled by 1/sqrt(A)
    wk_ref : (A, C)           W_K
    o_ref  : (pb, Ncp)        softmax assignment tile (lane axis = N_cub)
    k_ref  : (A, Ncp) scratch cached K projection for the current batch
    """
    # K projection is constant across the (innermost, "arbitrary") N_per axis:
    # compute it once per batch, keep it in VMEM scratch, reuse for all tiles.
    @pl.when(pl.program_id(1) == 0)
    def _():
        k = jnp.dot(wk_ref[...], xc_ref[...],
                    preferred_element_type=jnp.float32)            # (A, Ncp)
        k_ref[...] = k.astype(k_ref.dtype)

    # Q projection: canonical (M,K)@(K,N) matmul; 1/sqrt(A) already folded in.
    q_t = jnp.dot(xp_ref[...], wq_ref[...],
                  preferred_element_type=jnp.float32)              # (pb, A)

    # S = Q^T K with the softmax axis (N_cub) as the last / lane axis — again a
    # canonical matmul, no transposes anywhere in the kernel.
    s = jnp.dot(q_t.astype(k_ref.dtype), k_ref[...],
                preferred_element_type=jnp.float32)                # (pb, Ncp)

    if n_cub != n_cub_pad:
        # Padded cuboid columns must not contribute to the softmax.
        col = lax.broadcasted_iota(jnp.int32, s.shape, 1)
        s = jnp.where(col < n_cub, s, -1e30)

    # Numerically-stable softmax over the lane axis, in f32.
    # (On v6e/v7x the exp could be done in bf16 if the EUP ever saturates;
    #  kept f32 here — v5e has no bf16 EUP and precision is better.)
    m = jnp.max(s, axis=-1, keepdims=True)
    e = jnp.exp(s - m)
    denom = jnp.sum(e, axis=-1, keepdims=True)
    o_ref[...] = (e * pl.reciprocal(denom, approx=True)).astype(o_ref.dtype)


def _vmem_limit_bytes():
    """Explicit scoped-VMEM limit, derived from the actual chip when possible."""
    cap = 64 * 1024 * 1024          # conservative fallback (= v7x physical VMEM)
    try:
        cap = int(getattr(pltpu.get_tpu_info(), "vmem_capacity_bytes", cap))
    except Exception:
        pass
    # 3/4 of physical, capped at 100 MiB (v5e/v6e: 96 MiB; v7x: 48 MiB).
    return min(100 * 1024 * 1024, (cap * 3) // 4)


def _pick_per_block(n_per, n_cub_pad, c, a, in_bytes, out_bytes, vmem_budget):
    """Largest N_per tile whose double-buffered working set fits the budget."""
    fixed = 2 * c * n_cub_pad * in_bytes + a * n_cub_pad * 4      # xc slab + K scratch

    def fits(pb):
        return fixed + 2 * pb * (c * in_bytes + n_cub_pad * out_bytes) <= vmem_budget

    if n_per <= 512 and fits(n_per):
        return n_per
    for pb in (512, 256, 128, 64, 32, 16, 8):
        if n_per % pb == 0 and fits(pb):
            return pb
    # TODO(synk): flash-style online-softmax tiling over N_cub for slabs that do
    # not fit VMEM at any N_per tile size (very long cuboid sequences on v7x).
    return n_per if n_per <= 512 else 8


def attention_module(x_per, x_cuboid, w_q, w_k, attention_dim, *,
                     compute_dtype=jnp.bfloat16, out_dtype=jnp.float32,
                     per_block=None):
    """x_per: (B, 128, N_per), x_cuboid: (B, 128, N_cub), w_q/w_k: (A, 128)."""
    B, C, N_per = x_per.shape
    Bc, Cc, N_cub = x_cuboid.shape
    A = attention_dim
    assert (B, C) == (Bc, Cc), "x_per / x_cuboid batch or channel mismatch"
    assert w_q.shape == (A, C) and w_k.shape == (A, C)
    assert C % 8 == 0 and A % 8 == 0

    # Lane-dense compute/stores: pad the softmax (cuboid) axis to a multiple of
    # 128; padded columns are masked inside the kernel and sliced off below.
    n_cub_pad = ((N_cub + 127) // 128) * 128

    in_bytes = jnp.dtype(compute_dtype).itemsize
    out_bytes = jnp.dtype(out_dtype).itemsize
    vmem_limit = _vmem_limit_bytes()
    pb = per_block if per_block is not None else _pick_per_block(
        N_per, n_cub_pad, C, A, in_bytes, out_bytes, (vmem_limit * 3) // 4)
    assert N_per % pb == 0, "N_per must be divisible by the chosen tile size"
    assert pb % 8 == 0 or pb == N_per, "N_per tile must satisfy sublane tiling"

    # ---- wrapper-side layout plumbing (pure XLA, outside the kernel) ---------
    #  * x_per  -> point-major (B, N_per, C) so every kernel matmul is canonical.
    #  * x_cub  -> zero-padded to (B, C, n_cub_pad) for lane-dense output.
    #  * W_Q    -> transposed to (C, A) with 1/sqrt(A) folded in once.
    #  * all matmul operands cast to compute_dtype (bf16 default, f32 accum).
    xp_t = jnp.transpose(x_per, (0, 2, 1)).astype(compute_dtype)      # (B, N_per, C)
    xc = x_cuboid.astype(compute_dtype)                               # (B, C, N_cub)
    if n_cub_pad != N_cub:
        xc = jnp.pad(xc, ((0, 0), (0, 0), (0, n_cub_pad - N_cub)))
    wq_t = (w_q.T * (1.0 / float(A) ** 0.5)).astype(compute_dtype)    # (C, A)
    wk = w_k.astype(compute_dtype)                                    # (A, C)

    kernel = functools.partial(_attention_kernel, n_cub=N_cub, n_cub_pad=n_cub_pad)

    # Batch outer ("parallel", megacore-shardable), N_per tile innermost
    # ("arbitrary"): the cuboid slab / weights are constant across the inner
    # axis (no re-DMA) and the K-projection scratch reuse stays valid.
    grid = (B, N_per // pb)

    flops = 2 * B * (N_per * A * C + N_cub * A * C + N_per * N_cub * A)
    bytes_accessed = ((xp_t.size + xc.size + wq_t.size + wk.size) * in_bytes
                      + B * N_per * n_cub_pad * out_bytes)

    out = pl.pallas_call(
        kernel,
        out_shape=jax.ShapeDtypeStruct((B, N_per, n_cub_pad), out_dtype),
        grid_spec=pltpu.PrefetchScalarGridSpec(
            num_scalar_prefetch=0,
            grid=grid,
            in_specs=[
                pl.BlockSpec((None, pb, C), lambda b, p: (b, p, 0)),          # x_per tile
                pl.BlockSpec((None, C, n_cub_pad), lambda b, p: (b, 0, 0)),   # cuboid slab (reused over p)
                pl.BlockSpec((C, A), lambda b, p: (0, 0)),                    # W_Q^T (pre-scaled)
                pl.BlockSpec((A, C), lambda b, p: (0, 0)),                    # W_K
            ],
            out_specs=pl.BlockSpec((None, pb, n_cub_pad), lambda b, p: (b, p, 0)),
            scratch_shapes=[pltpu.VMEM((A, n_cub_pad), compute_dtype)],       # cached K projection
        ),
        compiler_params=pltpu.CompilerParams(
            dimension_semantics=("parallel", "arbitrary"),
            vmem_limit_bytes=vmem_limit),
        cost_estimate=pl.CostEstimate(
            flops=flops,
            transcendentals=B * N_per * n_cub_pad,
            bytes_accessed=bytes_accessed),
    )(xp_t, xc, wq_t, wk)

    return out[:, :, :N_cub] if n_cub_pad != N_cub else out


def _reference(x_per, x_cuboid, w_q, w_k, attention_dim):
    # Pure-JAX mirror of the PyTorch forward (HIGHEST precision so the reference
    # itself is not a bf16 approximation).
    hp = lax.Precision.HIGHEST
    Q = jnp.einsum("ac,bcn->ban", w_q, x_per, precision=hp) / (attention_dim ** 0.5)
    K = jnp.einsum("ac,bcm->bam", w_k, x_cuboid, precision=hp)
    S = jnp.einsum("bam,ban->bmn", K, Q, precision=hp)          # (B, N_cub, N_per)
    assign = jax.nn.softmax(S, axis=1)                          # softmax over N_cub
    return jnp.transpose(assign, (0, 2, 1))                     # (B, N_per, N_cub)


if __name__ == "__main__":
    B = 2
    C = 128            # fixed by the module (Conv1d in_channels=128)
    attention_dim = 32
    N_per = 16
    N_cub = 16

    key = jax.random.PRNGKey(0)
    k1, k2, k3, k4 = jax.random.split(key, 4)
    x_per = jax.random.normal(k1, (B, C, N_per), dtype=jnp.float32)
    x_cuboid = jax.random.normal(k2, (B, C, N_cub), dtype=jnp.float32)
    # deterministic "kaiming-ish" init for the 1x1 conv weights (A, 128)
    w_q = jax.random.normal(k3, (attention_dim, C), dtype=jnp.float32) * (2.0 / C) ** 0.5
    w_k = jax.random.normal(k4, (attention_dim, C), dtype=jnp.float32) * (2.0 / C) ** 0.5

    ref = _reference(x_per, x_cuboid, w_q, w_k, attention_dim)

    # f32-operand path: tight numerical check (slack only for approx reciprocal).
    out_f32 = attention_module(x_per, x_cuboid, w_q, w_k, attention_dim,
                               compute_dtype=jnp.float32)
    out_f32 = jax.block_until_ready(out_f32)
    assert out_f32.shape == (B, N_per, N_cub)
    assert jnp.allclose(out_f32, ref, atol=5e-3, rtol=5e-3), "f32 path mismatch"

    # Default production path: bf16 matmul operands, f32 accumulation.
    # Tolerance loosened: bf16 operand rounding perturbs logits by ~1e-2.
    out_bf16 = attention_module(x_per, x_cuboid, w_q, w_k, attention_dim)
    out_bf16 = jax.block_until_ready(out_bf16)
    assert out_bf16.shape == (B, N_per, N_cub)
    assert jnp.allclose(out_bf16, ref, atol=5e-2, rtol=5e-2), "bf16 path mismatch"

    print("KERNEL_OK")
</pallas_src>

<mosaic_0001>
module attributes {stable_mosaic.version = 11 : i64} {
  func.func @_attention_kernel(%arg0: i32, %arg1: i32, %arg2: memref<1x16x128xf32, #tpu.memory_space<vmem>>, %arg3: memref<1x128x128xf32, #tpu.memory_space<vmem>>, %arg4: memref<128x32xf32, #tpu.memory_space<vmem>>, %arg5: memref<32x128xf32, #tpu.memory_space<vmem>>, %arg6: memref<1x16x128xf32, #tpu.memory_space<vmem>>, %arg7: memref<32x128xf32, #tpu.memory_space<vmem>>) attributes {dimension_semantics = [#tpu.dimension_semantics<parallel>, #tpu.dimension_semantics<arbitrary>], iteration_bounds = array<i64: 2, 1>, scalar_prefetch = 0 : i64, scratch_operands = 1 : i64, tpu.core_type = #tpu.core_type<tc>, window_params = [{transform_indices = @transform_0, window_bounds = array<i64: 1, 16, 128>}, {transform_indices = @transform_1, window_bounds = array<i64: 1, 128, 128>}, {pipeline_mode = #tpu.pipeline_mode<synchronous>, transform_indices = @transform_2, window_bounds = array<i64: 128, 32>}, {pipeline_mode = #tpu.pipeline_mode<synchronous>, transform_indices = @transform_3, window_bounds = array<i64: 32, 128>}, {transform_indices = @transform_4, window_bounds = array<i64: 1, 16, 128>}]} {
    %c0_i32 = arith.constant 0 : i32
    %0 = arith.cmpi eq, %arg1, %c0_i32 : i32
    %1 = arith.extui %0 : i1 to i32
    %c0_i32_0 = arith.constant 0 : i32
    %2 = arith.cmpi ne, %1, %c0_i32_0 : i32
    scf.if %2 {
      %c0_14 = arith.constant 0 : index
      %c0_15 = arith.constant 0 : index
      %27 = vector.load %arg5[%c0_14, %c0_15] : memref<32x128xf32, #tpu.memory_space<vmem>>, vector<32x128xf32>
      %c0_16 = arith.constant 0 : index
      %c0_17 = arith.constant 0 : index
      %c0_18 = arith.constant 0 : index
      %28 = vector.load %arg3[%c0_16, %c0_17, %c0_18] : memref<1x128x128xf32, #tpu.memory_space<vmem>>, vector<1x128x128xf32>
      %29 = vector.shape_cast %28 : vector<1x128x128xf32> to vector<128x128xf32>
      %cst_19 = arith.constant dense<0.000000e+00> : vector<32x128xf32>
      %30 = tpu.matmul %27, %29, %cst_19 {dimension_numbers = #tpu.dot_dimension_numbers<[1], [0], [0], [1], [0, 0, 1, 1], [], []>} : vector<32x128xf32>, vector<128x128xf32>, vector<32x128xf32> -> vector<32x128xf32>
      %c0_20 = arith.constant 0 : index
      %c0_21 = arith.constant 0 : index
      %31 = vector.load %arg7[%c0_20, %c0_21] : memref<32x128xf32, #tpu.memory_space<vmem>>, vector<32x128xf32>
      tpu.vector_store %arg7[%c0_20, %c0_21], %30 {strides = array<i32>} : memref<32x128xf32, #tpu.memory_space<vmem>>, vector<32x128xf32>,
    } else {
    }
    %c0 = arith.constant 0 : index
    %c0_1 = arith.constant 0 : index
    %c0_2 = arith.constant 0 : index
    %3 = vector.load %arg2[%c0, %c0_1, %c0_2] : memref<1x16x128xf32, #tpu.memory_space<vmem>>, vector<1x16x128xf32>
    %4 = vector.shape_cast %3 : vector<1x16x128xf32> to vector<16x128xf32>
    %c0_3 = arith.constant 0 : index
    %c0_4 = arith.constant 0 : index
    %5 = vector.load %arg4[%c0_3, %c0_4] : memref<128x32xf32, #tpu.memory_space<vmem>>, vector<128x32xf32>
    %cst = arith.constant dense<0.000000e+00> : vector<16x32xf32>
    %6 = tpu.matmul %4, %5, %cst {dimension_numbers = #tpu.dot_dimension_numbers<[1], [0], [0], [1], [0, 0, 1, 1], [], []>} : vector<16x128xf32>, vector<128x32xf32>, vector<16x32xf32> -> vector<16x32xf32>
    %c0_5 = arith.constant 0 : index
    %c0_6 = arith.constant 0 : index
    %7 = vector.load %arg7[%c0_5, %c0_6] : memref<32x128xf32, #tpu.memory_space<vmem>>, vector<32x128xf32>
    %cst_7 = arith.constant dense<0.000000e+00> : vector<16x128xf32>
    %8 = tpu.matmul %6, %7, %cst_7 {dimension_numbers = #tpu.dot_dimension_numbers<[1], [0], [0], [1], [0, 0, 1, 1], [], []>} : vector<16x32xf32>, vector<32x128xf32>, vector<16x128xf32> -> vector<16x128xf32>
    %9 = tpu.iota {dimensions = array<i32: 1>} : vector<16x128xi32>
    %c16_i32 = arith.constant 16 : i32
    %10 = vector.broadcast %c16_i32 : i32 to vector<16x128xi32>
    %11 = arith.cmpi slt, %9, %10 : vector<16x128xi32>
    %cst_8 = arith.constant -1.000000e+30 : f32
    %12 = vector.broadcast %cst_8 : f32 to vector<16x128xf32>
    %13 = arith.select %11, %8, %12 : vector<16x128xi1>, vector<16x128xf32>
    %cst_9 = arith.constant dense<0xFF800000> : vector<16xf32>
    %14 = vector.multi_reduction <maximumf>, %13, %cst_9 [1] : vector<16x128xf32> to vector<16xf32>
    %15 = vector.shape_cast %14 : vector<16xf32> to vector<16x1xf32>
    %16 = vector.broadcast %15 : vector<16x1xf32> to vector<16x128xf32>
    %17 = arith.subf %13, %16 : vector<16x128xf32>
    %18 = math.exp %17 : vector<16x128xf32>
    %cst_10 = arith.constant dense<0.000000e+00> : vector<16xf32>
    %19 = vector.multi_reduction <add>, %18, %cst_10 [1] : vector<16x128xf32> to vector<16xf32>
    %20 = vector.shape_cast %19 : vector<16xf32> to vector<16x1xf32>
    %21 = tpu.reciprocal %20 {approx = true} : vector<16x1xf32> -> vector<16x1xf32>
    %22 = vector.broadcast %21 : vector<16x1xf32> to vector<16x128xf32>
    %23 = arith.mulf %18, %22 : vector<16x128xf32>
    %c0_11 = arith.constant 0 : index
    %c0_12 = arith.constant 0 : index
    %c0_13 = arith.constant 0 : index
    %24 = vector.load %arg6[%c0_11, %c0_12, %c0_13] : memref<1x16x128xf32, #tpu.memory_space<vmem>>, vector<1x16x128xf32>
    %25 = vector.shape_cast %24 : vector<1x16x128xf32> to vector<16x128xf32>
    %26 = vector.shape_cast %23 : vector<16x128xf32> to vector<1x16x128xf32>
    tpu.vector_store %arg6[%c0_11, %c0_12, %c0_13], %26 {strides = array<i32>} : memref<1x16x128xf32, #tpu.memory_space<vmem>>, vector<1x16x128xf32>,
    return
  }
  func.func @transform_0(%arg0: i32, %arg1: i32) -> (i32, i32, i32) {
    %c0_i32 = arith.constant 0 : i32
    %c0_i32_0 = arith.constant 0 : i32
    return %arg0, %arg1, %c0_i32 : i32, i32, i32
  }
  func.func @transform_1(%arg0: i32, %arg1: i32) -> (i32, i32, i32) {
    %c0_i32 = arith.constant 0 : i32
    %c0_i32_0 = arith.constant 0 : i32
    %c0_i32_1 = arith.constant 0 : i32
    return %arg0, %c0_i32, %c0_i32_0 : i32, i32, i32
  }
  func.func @transform_2(%arg0: i32, %arg1: i32) -> (i32, i32) {
    %c0_i32 = arith.constant 0 : i32
    %c0_i32_0 = arith.constant 0 : i32
    %c0_i32_1 = arith.constant 0 : i32
    return %c0_i32, %c0_i32_0 : i32, i32
  }
  func.func @transform_3(%arg0: i32, %arg1: i32) -> (i32, i32) {
    %c0_i32 = arith.constant 0 : i32
    %c0_i32_0 = arith.constant 0 : i32
    %c0_i32_1 = arith.constant 0 : i32
    return %c0_i32, %c0_i32_0 : i32, i32
  }
  func.func @transform_4(%arg0: i32, %arg1: i32) -> (i32, i32, i32) {
    %c0_i32 = arith.constant 0 : i32
    %c0_i32_0 = arith.constant 0 : i32
    return %arg0, %arg1, %c0_i32 : i32, i32, i32
  }
}

</mosaic_0001>

<llo_original>
// kernel: tpu_custom_call.1
$region0: #{tpu_custom_call.1}
  #allocation0 [shape = 'u32[]', space=smem, size = 0x4, offset = 0x4, fixed_abs, tag = 'smem constant byte address 0x4 - core index']
  #allocation1 [shape = 'u32[144,128]{1,0:T(1,128)}', space=vmem, size = 0x12000, scoped, tag = 'internal scratch']
  #allocation2 [shape = 'f32[32,128]{1,0:T(8,128)}', space=vmem, size = 0x4000, scoped, tag = 'scratch operand']
  %s0 = inlined_call_operand.vmem [shape: f32[2,16,128], index: 0, kind: input, shape index: {}]
  %s1 = inlined_call_operand.hbm [shape: f32[2,128,128], index: 1, kind: input, shape index: {}]
  %s2 = inlined_call_operand.vmem [shape: f32[128,32], index: 2, kind: input, shape index: {}]
  %s3 = inlined_call_operand.vmem [shape: f32[32,128], index: 3, kind: input, shape index: {}]
  %s4 = inlined_call_operand.hbm [shape: f32[2,16,128], index: 4, kind: output, shape index: {}]
  %s5 = sld [smem:[#allocation0]]
  $region57: #{tpu_custom_call.1} parent=0
    _
  %s7 = ssub.s32 1, %s5
  %s8 = scalar_select 0, %s7, %s5
  $region1: #{tpu_custom_call.1} parent=0
    #allocation3 [shape = 'u8[131072]{0}', space=vmem, size = 0x20000, scoped, tag = 'input window, operand 1']
    #allocation4 [shape = 's32[2]{0}', space=sflag, size = 0x8, scoped, tag = 'scoped memory for tpu_custom_call.1']
    #allocation5 [shape = 's32[2]{0}', space=sflag, size = 0x8, scoped, tag = 'scoped memory for tpu_custom_call.1']
    #allocation6 [shape = 'u8[16384]{0}', space=vmem, size = 0x4000, scoped, tag = 'output window, operand 0']
    %9 = vsyncpa [#allocation4], 0
    %s10 = scalar_lea.sflag [#allocation4], 1
    %11 = vsyncpa %s10, 0
    %12 = vsyncpa [#allocation5], 0
    %s13 = scalar_lea.sflag [#allocation5], 1
    %14 = vsyncpa %s13, 0
    loop: start=0, step=1, limit=4
    $region2: #{tpu_custom_call.1} parent=1 // loop_pre_header
      _
    $region3: #{tpu_custom_call.1} parent=1 // loop_header
      %s16 = sphi 0, %s20
      %p17 = scmp.ge.s32.totalorder %s16, 4
      %s23 = sphi 0, %s35
      %s24 = sphi 0, %s31
      %s25 = sphi 0, %s23
      %s26 = sphi 0, %s24
      %s27 = sphi 0, %s25
      %s28 = sphi 0, %s26
      %s40 = sphi 0, %s42
      %s43 = sphi 0, %s40
      %s44 = sphi 0, %s43
      %s60 = sphi 0, %s44
      %s66 = sphi 0, %s68
      %s69 = sphi 0, %s66
      %s70 = sphi 0, %s69
      %s86 = sphi 0, %s70
      %s90 = sphi 0, %s90
      %s92 = sphi 0, %s90
      %s93 = sphi 0, %s92
      %s107 = sphi 0, %s93
      %s111 = sphi 0, %s111
      %s113 = sphi 0, %s111
      %s114 = sphi 0, %s113
      %s128 = sphi 0, %s114
      %s136 = sphi 0, %s138
      %s139 = sphi 0, %s136
      %s140 = sphi 0, %s139
      %s156 = sphi 0, %s140
    $region4: #{tpu_custom_call.1} parent=1 // loop_header_branch
      %19 = sbr.rel (%p17) target = $region8
    $region5: #{tpu_custom_call.1} parent=1 // loop_body
      %s21 = ssub.s32 %s16, 1
      %s22 = ssub.s32 %s16, 2
      %s29 = sadd.s32 1, %s24
      %p30 = scmp.ge.s32.totalorder %s29, 1
      %s31 = scalar_select %p30, 0, %s29
      %s32 = sadd.s32 1, %s23
      %s33 = scalar_select %p30, %s32, %s23
      %p34 = scmp.ge.s32.totalorder %s33, 2
      %s35 = scalar_select %p34, 0, %s33
      %s36 = ssub.s32 %s23, %s35
      %s37 = ssub.s32 %s24, %s31
      %s38 = sor.u32 %s36, %s37
      %p39 = scmp.eq.s32.totalorder %s38, 0
      %s41 = sadd.s32 %s40, 1
      %s42 = scalar_select %p39, %s40, %s41
      %p45 = pneg %p39
      %p46 = scmp.eq.s32.totalorder %s16, 1
      %p47 = por %p45, %p46
      %p48 = scmp.ne.s32.totalorder %s40, %s43
      %p49 = scmp.eq.s32.totalorder %s16, 0
      %p50 = por %p48, %p49
      %p51 = scmp.ne.s32.totalorder %s40, %s43
      %p52 = scmp.eq.s32.totalorder %s21, 1
      %p53 = por %p51, %p52
      %p54 = scmp.ne.s32.totalorder %s43, %s44
      %p55 = scmp.eq.s32.totalorder %s21, 0
      %p56 = por %p54, %p55
      %p57 = scmp.ne.s32.totalorder %s43, %s44
      %p58 = scmp.eq.s32.totalorder %s22, 1
      %p59 = por %p57, %p58
      %p61 = scmp.ne.s32.totalorder %s44, %s60
      %p62 = scmp.eq.s32.totalorder %s22, 0
      %p63 = por %p61, %p62
      %s64 = ssub.s32 %s23, %s35
      %p65 = scmp.eq.s32.totalorder %s64, 0
      %s67 = sadd.s32 %s66, 1
      %s68 = scalar_select %p65, %s66, %s67
      %p71 = pneg %p65
      %p72 = scmp.eq.s32.totalorder %s16, 1
      %p73 = por %p71, %p72
      %p74 = scmp.ne.s32.totalorder %s66, %s69
      %p75 = scmp.eq.s32.totalorder %s16, 0
      %p76 = por %p74, %p75
      %p77 = scmp.ne.s32.totalorder %s66, %s69
      %p78 = scmp.eq.s32.totalorder %s21, 1
      %p79 = por %p77, %p78
      %p80 = scmp.ne.s32.totalorder %s69, %s70
      %p81 = scmp.eq.s32.totalorder %s21, 0
      %p82 = por %p80, %p81
      %p83 = scmp.ne.s32.totalorder %s69, %s70
      %p84 = scmp.eq.s32.totalorder %s22, 1
      %p85 = por %p83, %p84
      %p87 = scmp.ne.s32.totalorder %s70, %s86
      %p88 = scmp.eq.s32.totalorder %s22, 0
      %p89 = por %p87, %p88
      %s91 = sadd.s32 %s90, 1
      %p94 = scmp.eq.s32.totalorder %s16, 1
      %p95 = scmp.ne.s32.totalorder %s90, %s92
      %p96 = scmp.eq.s32.totalorder %s16, 0
      %p97 = por %p95, %p96
      %p98 = scmp.ne.s32.totalorder %s90, %s92
      %p99 = scmp.eq.s32.totalorder %s21, 1
      %p100 = por %p98, %p99
      %p101 = scmp.ne.s32.totalorder %s92, %s93
      %p102 = scmp.eq.s32.totalorder %s21, 0
      %p103 = por %p101, %p102
      %p104 = scmp.ne.s32.totalorder %s92, %s93
      %p105 = scmp.eq.s32.totalorder %s22, 1
      %p106 = por %p104, %p105
      %p108 = scmp.ne.s32.totalorder %s93, %s107
      %p109 = scmp.eq.s32.totalorder %s22, 0
      %p110 = por %p108, %p109
      %s112 = sadd.s32 %s111, 1
      %p115 = scmp.eq.s32.totalorder %s16, 1
      %p116 = scmp.ne.s32.totalorder %s111, %s113
      %p117 = scmp.eq.s32.totalorder %s16, 0
      %p118 = por %p116, %p117
      %p119 = scmp.ne.s32.totalorder %s111, %s113
      %p120 = scmp.eq.s32.totalorder %s21, 1
      %p121 = por %p119, %p120
      %p122 = scmp.ne.s32.totalorder %s113, %s114
      %p123 = scmp.eq.s32.totalorder %s21, 0
      %p124 = por %p122, %p123
      %p125 = scmp.ne.s32.totalorder %s113, %s114
      %p126 = scmp.eq.s32.totalorder %s22, 1
      %p127 = por %p125, %p126
      %p129 = scmp.ne.s32.totalorder %s114, %s128
      %p130 = scmp.eq.s32.totalorder %s22, 0
      %p131 = por %p129, %p130
      %s132 = ssub.s32 %s23, %s35
      %s133 = ssub.s32 %s24, %s31
      %s134 = sor.u32 %s132, %s133
      %p135 = scmp.eq.s32.totalorder %s134, 0
      %s137 = sadd.s32 %s136, 1
      %s138 = scalar_select %p135, %s136, %s137
      %p141 = pneg %p135
      %p142 = scmp.eq.s32.totalorder %s16, 1
      %p143 = por %p141, %p142
      %p144 = scmp.ne.s32.totalorder %s136, %s139
      %p145 = scmp.eq.s32.totalorder %s16, 0
      %p146 = por %p144, %p145
      %p147 = scmp.ne.s32.totalorder %s136, %s139
      %p148 = scmp.eq.s32.totalorder %s21, 1
      %p149 = por %p147, %p148
      %p150 = scmp.ne.s32.totalorder %s139, %s140
      %p151 = scmp.eq.s32.totalorder %s21, 0
      %p152 = por %p150, %p151
      %p153 = scmp.ne.s32.totalorder %s139, %s140
      %p154 = scmp.eq.s32.totalorder %s22, 1
      %p155 = por %p153, %p154
      %p157 = scmp.ne.s32.totalorder %s140, %s156
      %p158 = scmp.eq.s32.totalorder %s22, 0
      %p159 = por %p157, %p158
      %p160 = scmp.le.s32.totalorder 1, %s16
      %p161 = scmp.lt.s32.totalorder %s16, 3
      %p162 = pnand %p160, %p161
      %p163 = pneg %p162
      // Predicated region
      $region9: #{tpu_custom_call.1} parent=5 // pred_check
        _
      $region10: #{tpu_custom_call.1} parent=5 // pred_check_branch
        %165 = sbr.rel (%p162) target = $region12
      $region11: #{tpu_custom_call.1} parent=5 // pred_region
        %s166 = ssub.s32 %s16, 1
        // Predicated region
        $region13: #{tpu_custom_call.1} parent=11 // pred_check
          %p167 = pneg %p103
        $region14: #{tpu_custom_call.1} parent=11 // pred_check_branch
          %169 = sbr.rel (%p167) target = $region16
        $region15: #{tpu_custom_call.1} parent=11 // pred_region
          _
        $region16: #{tpu_custom_call.1} parent=11 // pred_fallthru
          _
        // Predicated region
        $region17: #{tpu_custom_call.1} parent=11 // pred_check
          %p170 = pneg %p124
        $region18: #{tpu_custom_call.1} parent=11 // pred_check_branch
          %172 = sbr.rel (%p170) target = $region20
        $region19: #{tpu_custom_call.1} parent=11 // pred_region
          _
        $region20: #{tpu_custom_call.1} parent=11 // pred_fallthru
          _
      $region12: #{tpu_custom_call.1} parent=5 // pred_fallthru
        _
      %p173 = scmp.lt.s32.totalorder %s16, 2
      // Predicated region
      $region21: #{tpu_custom_call.1} parent=5 // pred_check
        %p174 = pneg %p173
      $region22: #{tpu_custom_call.1} parent=5 // pred_check_branch
        %176 = sbr.rel (%p174) target = $region24
      $region23: #{tpu_custom_call.1} parent=5 // pred_region
        // Predicated region
        $region25: #{tpu_custom_call.1} parent=23 // pred_check
          %p177 = pneg %p50
        $region26: #{tpu_custom_call.1} parent=23 // pred_check_branch
          %179 = sbr.rel (%p177) target = $region28
        $region27: #{tpu_custom_call.1} parent=23 // pred_region
          %s180 = smul.u32 2, %s24
          %p181 = scmp.lt.s32.totalorder %s23, 1
          %s182 = scalar_select %p181, %s23, 1
          %p183 = scmp.lt.s32.totalorder %s180, 1
          %s184 = scalar_select %p183, %s180, 1
          %s185 = smul.addr %s182, 2
          %s186 = sadd.s32 %s184, %s185
          %s187 = smul.addr %s186, 8
          %s188 = scalar_lea.vmem %s0, %s187
          %s189 = smul.u32 2, %s24
        $region28: #{tpu_custom_call.1} parent=23 // pred_fallthru
          _
        // Predicated region
        $region29: #{tpu_custom_call.1} parent=23 // pred_check
          %p190 = pneg %p76
        $region30: #{tpu_custom_call.1} parent=23 // pred_check_branch
          %192 = sbr.rel (%p190) target = $region32
        $region31: #{tpu_custom_call.1} parent=23 // pred_region
          %s193 = sand.u32 %s66, 1
          %s194 = scalar_lea.sflag [#allocation4], %s193
          %s195 = sand.u32 %s66, 1
          %s196 = smul.addr %s195, 128
          %s197 = scalar_lea.vmem [#allocation3], %s196
          %s199 = ssub.s32 2048, 2048
          %200 = vsyncadd %s194, %s199
          %s201 = smul.addr %s23, 16
          %s202 = smul.addr %s201, 128
          %s203 = scalar_lea.hbm %s1, %s202
          %s204 = sshll.u32 %s197, 4
          %s205 = int_to_ptr.vmem [resolvable:$true] %s204
          %210 = dma.hbm_to_vmem [thread:$0]  %s203, 2048, %s205, %s194, 128, 128, 8
        $region32: #{tpu_custom_call.1} parent=23 // pred_fallthru
          _
      $region24: #{tpu_custom_call.1} parent=5 // pred_fallthru
        _
      %p211 = scmp.le.s32.totalorder 1, %s16
      %p212 = scmp.lt.s32.totalorder %s16, 3
      %p213 = pnand %p211, %p212
      %p214 = pneg %p213
      // Predicated region
      $region33: #{tpu_custom_call.1} parent=5 // pred_check
        _
      $region34: #{tpu_custom_call.1} parent=5 // pred_check_branch
        %216 = sbr.rel (%p213) target = $region36
      $region35: #{tpu_custom_call.1} parent=5 // pred_region
        %s217 = ssub.s32 %s16, 1
        %s218 = sand.u32 %s69, 1
        %s219 = scalar_lea.sflag [#allocation4], %s218
        %s220 = sand.u32 %s69, 1
        %s221 = smul.addr %s220, 128
        %s222 = scalar_lea.vmem [#allocation3], %s221
        // Predicated region
        $region37: #{tpu_custom_call.1} parent=35 // pred_check
          %p223 = pneg %p82
        $region38: #{tpu_custom_call.1} parent=35 // pred_check_branch
          %225 = sbr.rel (%p223) target = $region40
        $region39: #{tpu_custom_call.1} parent=35 // pred_region
          %226 = dma.done %s219, 2048
        $region40: #{tpu_custom_call.1} parent=35 // pred_fallthru
          _
        %s227 = smul.u32 2, %s26
        %p228 = scmp.lt.s32.totalorder %s25, 1
        %s229 = scalar_select %p228, %s25, 1
        %p230 = scmp.lt.s32.totalorder %s227, 1
        %s231 = scalar_select %p230, %s227, 1
        %s232 = smul.addr %s229, 2
        %s233 = sadd.s32 %s231, %s232
        %s234 = smul.addr %s233, 8
        %s235 = scalar_lea.vmem %s0, %s234
        %p236 = pneg %p56
        %p237 = pneg %p53
        %s238 = sand.u32 %s69, 1
        %s239 = scalar_lea.sflag [#allocation4], %s238
        %s240 = sand.u32 %s69, 1
        %s241 = smul.addr %s240, 128
        %s242 = scalar_lea.vmem [#allocation3], %s241
        %p243 = pneg %p82
        %p244 = pneg %p79
        %p245 = pneg %p103
        %p246 = pneg %p100
        %p247 = pneg %p124
        %p248 = pneg %p121
        %p249 = pneg %p152
        %p250 = pneg %p149
        %s251 = sand.u32 %s139, 1
        %s252 = scalar_lea.sflag [#allocation5], %s251
        %s253 = sand.u32 %s139, 1
        %s254 = smul.addr %s253, 16
        %s255 = scalar_lea.vmem [#allocation6], %s254
        %s256 = smul.u32 2, %s26
        %p257 = scmp.lt.s32.totalorder %s25, 1
        %s258 = scalar_select %p257, %s25, 1
        %p259 = scmp.lt.s32.totalorder %s256, 1
        %s260 = scalar_select %p259, %s256, 1
        %s261 = smul.addr %s258, 2
        %s262 = sadd.s32 %s260, %s261
        %s263 = smul.addr %s262, 8
        %s264 = scalar_lea.vmem %s0, %s263
        %s265 = smul.u32 2, %s26
        %s266 = smul.u32 2, %s26
        %p267 = scmp.eq.s32.totalorder %s26, 0
        // Predicated region
        $region41: #{tpu_custom_call.1} parent=35 // pred_check
          %p268 = pneg %p267
        $region42: #{tpu_custom_call.1} parent=35 // pred_check_branch
          %270 = sbr.rel (%p268) target = $region44
        $region43: #{tpu_custom_call.1} parent=35 // pred_region
          %v271 = vld [vmem:[%s3] sm:$0xff]
          %v272 = vld [vmem:[%s3 + $0x8] sm:$0xff]
          %v273 = vld [vmem:[%s3 + $0x10] sm:$0xff]
          %v274 = vld [vmem:[%s3 + $0x18] sm:$0xff]
          %v275 = vld [vmem:[%s222] sm:$0xff]
          %v276 = vld [vmem:[%s222 + $0x8] sm:$0xff]
          %v277 = vld [vmem:[%s222 + $0x10] sm:$0xff]
          %v278 = vld [vmem:[%s222 + $0x18] sm:$0xff]
          %v279 = vld [vmem:[%s222 + $0x20] sm:$0xff]
          %v280 = vld [vmem:[%s222 + $0x28] sm:$0xff]
          %v281 = vld [vmem:[%s222 + $0x30] sm:$0xff]
          %v282 = vld [vmem:[%s222 + $0x38] sm:$0xff]
          %v283 = vld [vmem:[%s222 + $0x40] sm:$0xff]
          %v284 = vld [vmem:[%s222 + $0x48] sm:$0xff]
          %v285 = vld [vmem:[%s222 + $0x50] sm:$0xff]
          %v286 = vld [vmem:[%s222 + $0x58] sm:$0xff]
          %v287 = vld [vmem:[%s222 + $0x60] sm:$0xff]
          %v288 = vld [vmem:[%s222 + $0x68] sm:$0xff]
          %v289 = vld [vmem:[%s222 + $0x70] sm:$0xff]
          %v290 = vld [vmem:[%s222 + $0x78] sm:$0xff]
          %291 = vmatprep.subr.mxu0 0.0
          %292 = vmatpush1.msra.mxu0 %v290
          %293 = vmatprep.subr.mxu0 0.0
          %294 = vmatpush1.msra.mxu0 %v289
          %295 = vmatprep.subr.mxu0 0.0
          %296 = vmatpush1.msra.mxu0 %v288
          %297 = vmatprep.subr.mxu0 0.0
          %298 = vmatpush1.msra.mxu0 %v287
          %299 = vmatprep.subr.mxu0 0.0
          %300 = vmatpush1.msra.mxu0 %v286
          %301 = vmatprep.subr.mxu0 0.0
          %302 = vmatpush1.msra.mxu0 %v285
          %303 = vmatprep.subr.mxu0 0.0
          %304 = vmatpush1.msra.mxu0 %v284
          %305 = vmatprep.subr.mxu0 0.0
          %306 = vmatpush1.msra.mxu0 %v283
          %307 = vmatprep.subr.mxu0 0.0
          %308 = vmatpush1.msra.mxu0 %v282
          %309 = vmatprep.subr.mxu0 0.0
          %310 = vmatpush1.msra.mxu0 %v281
          %311 = vmatprep.subr.mxu0 0.0
          %312 = vmatpush1.msra.mxu0 %v280
          %313 = vmatprep.subr.mxu0 0.0
          %314 = vmatpush1.msra.mxu0 %v279
          %315 = vmatprep.subr.mxu0 0.0
          %316 = vmatpush1.msra.mxu0 %v278
          %317 = vmatprep.subr.mxu0 0.0
          %318 = vmatpush1.msra.mxu0 %v277
          %319 = vmatprep.subr.mxu0 0.0
          %320 = vmatpush1.msra.mxu0 %v276
          %321 = vmatprep.subr.mxu0 0.0
          %322 = vmatpush1.msra.mxu0 %v275
          %323 = vmatprep.subr.mxu0 0.0
          %324 = vmatpush2.msra.mxu0 0.0
          %325 = vmatprep.subr.mxu0 0.0
          %326 = vmatpush2.msra.mxu0 0.0
          %327 = vmatprep.subr.mxu0 0.0
          %328 = vmatpush2.msra.mxu0 0.0
          %329 = vmatprep.subr.mxu0 0.0
          %330 = vmatpush2.msra.mxu0 0.0
          %331 = vmatprep.subr.mxu0 0.0
          %332 = vmatpush2.msra.mxu0 0.0
          %333 = vmatprep.subr.mxu0 0.0
          %334 = vmatpush2.msra.mxu0 0.0
          %335 = vmatprep.subr.mxu0 0.0
          %336 = vmatpush2.msra.mxu0 0.0
          %337 = vmatprep.subr.mxu0 0.0
          %338 = vmatpush2.msra.mxu0 0.0
          %339 = vmatprep.subr.mxu0 0.0
          %340 = vmatpush2.msra.mxu0 0.0
          %341 = vmatprep.subr.mxu0 0.0
          %342 = vmatpush2.msra.mxu0 0.0
          %343 = vmatprep.subr.mxu0 0.0
          %344 = vmatpush2.msra.mxu0 0.0
          %345 = vmatprep.subr.mxu0 0.0
          %346 = vmatpush2.msra.mxu0 0.0
          %347 = vmatprep.subr.mxu0 0.0
          %348 = vmatpush2.msra.mxu0 0.0
          %349 = vmatprep.subr.mxu0 0.0
          %350 = vmatpush2.msra.mxu0 0.0
          %351 = vmatprep.subr.mxu0 0.0
          %352 = vmatpush2.msra.mxu0 0.0
          %353 = vmatprep.subr.mxu0 0.0
          %354 = vmatpush2.msra.mxu0 0.0
          %355 = vmatprep.mubr.f32.mxu0 0.0
          %356 = vmatmul.mubr.f32.gmra.mxu0 %v271
          %v357 = vpop.f32.mrf.mxu0
          %v358 = vadd.f32 0.0, %v357
          %v359 = vpop.f32.mrf.mxu0
          %360 = vmatprep.mubr.f32.mxu0 0.0
          %361 = vmatmul.mubr.f32.gmra.mxu0 %v272
          %v362 = vpop.f32.mrf.mxu0
          %v363 = vadd.f32 0.0, %v362
          %v364 = vpop.f32.mrf.mxu0
          %365 = vmatprep.mubr.f32.mxu0 0.0
          %366 = vmatmul.mubr.f32.gmra.mxu0 %v273
          %v367 = vpop.f32.mrf.mxu0
          %v368 = vadd.f32 0.0, %v367
          %v369 = vpop.f32.mrf.mxu0
          %370 = vmatprep.mubr.f32.mxu0 0.0
          %371 = vmatmul.mubr.f32.gmra.mxu0 %v274
          %v372 = vpop.f32.mrf.mxu0
          %v373 = vadd.f32 0.0, %v372
          %v374 = vpop.f32.mrf.mxu0
          %375 = vdwg.mxu0
          %376 = vst [vmem:[#allocation2] sm:$0xff] %v358
          %377 = vst [vmem:[#allocation2 + $0x8] sm:$0xff] %v363
          %378 = vst [vmem:[#allocation2 + $0x10] sm:$0xff] %v368
          %379 = vst [vmem:[#allocation2 + $0x18] sm:$0xff] %v373
        $region44: #{tpu_custom_call.1} parent=35 // pred_fallthru
          _
        %v380 = vld [vmem:[%s264] sm:$0xff]
        %v381 = vld [vmem:[%s264 + $0x8] sm:$0xff]
        %v382 = vld [vmem:[%s2] sm:$0xff]
        %v383 = vld [vmem:[%s2 + $0x8] sm:$0xff]
        %v384 = vld [vmem:[%s2 + $0x10] sm:$0xff]
        %v385 = vld [vmem:[%s2 + $0x18] sm:$0xff]
        %v386 = vld [vmem:[%s2 + $0x20] sm:$0xff]
        %v387 = vld [vmem:[%s2 + $0x28] sm:$0xff]
        %v388 = vld [vmem:[%s2 + $0x30] sm:$0xff]
        %v389 = vld [vmem:[%s2 + $0x38] sm:$0xff]
        %v390 = vld [vmem:[%s2 + $0x40] sm:$0xff]
        %v391 = vld [vmem:[%s2 + $0x48] sm:$0xff]
        %v392 = vld [vmem:[%s2 + $0x50] sm:$0xff]
        %v393 = vld [vmem:[%s2 + $0x58] sm:$0xff]
        %v394 = vld [vmem:[%s2 + $0x60] sm:$0xff]
        %v395 = vld [vmem:[%s2 + $0x68] sm:$0xff]
        %v396 = vld [vmem:[%s2 + $0x70] sm:$0xff]
        %v397 = vld [vmem:[%s2 + $0x78] sm:$0xff]
        %398 = vmatprep.subr.mxu0 0.0
        %399 = vmatpush1.msra.mxu0 %v397
        %400 = vmatprep.subr.mxu0 0.0
        %401 = vmatpush1.msra.mxu0 %v396
        %402 = vmatprep.subr.mxu0 0.0
        %403 = vmatpush1.msra.mxu0 %v395
        %404 = vmatprep.subr.mxu0 0.0
        %405 = vmatpush1.msra.mxu0 %v394
        %406 = vmatprep.subr.mxu0 0.0
        %407 = vmatpush1.msra.mxu0 %v393
        %408 = vmatprep.subr.mxu0 0.0
        %409 = vmatpush1.msra.mxu0 %v392
        %410 = vmatprep.subr.mxu0 0.0
        %411 = vmatpush1.msra.mxu0 %v391
        %412 = vmatprep.subr.mxu0 0.0
        %413 = vmatpush1.msra.mxu0 %v390
        %414 = vmatprep.subr.mxu0 0.0
        %415 = vmatpush1.msra.mxu0 %v389
        %416 = vmatprep.subr.mxu0 0.0
        %417 = vmatpush1.msra.mxu0 %v388
        %418 = vmatprep.subr.mxu0 0.0
        %419 = vmatpush1.msra.mxu0 %v387
        %420 = vmatprep.subr.mxu0 0.0
        %421 = vmatpush1.msra.mxu0 %v386
        %422 = vmatprep.subr.mxu0 0.0
        %423 = vmatpush1.msra.mxu0 %v385
        %424 = vmatprep.subr.mxu0 0.0
        %425 = vmatpush1.msra.mxu0 %v384
        %426 = vmatprep.subr.mxu0 0.0
        %427 = vmatpush1.msra.mxu0 %v383
        %428 = vmatprep.subr.mxu0 0.0
        %429 = vmatpush1.msra.mxu0 %v382
        %430 = vmatprep.subr.mxu0 0.0
        %431 = vmatpush2.msra.mxu0 0.0
        %432 = vmatprep.subr.mxu0 0.0
        %433 = vmatpush2.msra.mxu0 0.0
        %434 = vmatprep.subr.mxu0 0.0
        %435 = vmatpush2.msra.mxu0 0.0
        %436 = vmatprep.subr.mxu0 0.0
        %437 = vmatpush2.msra.mxu0 0.0
        %438 = vmatprep.subr.mxu0 0.0
        %439 = vmatpush2.msra.mxu0 0.0
        %440 = vmatprep.subr.mxu0 0.0
        %441 = vmatpush2.msra.mxu0 0.0
        %442 = vmatprep.subr.mxu0 0.0
        %443 = vmatpush2.msra.mxu0 0.0
        %444 = vmatprep.subr.mxu0 0.0
        %445 = vmatpush2.msra.mxu0 0.0
        %446 = vmatprep.subr.mxu0 0.0
        %447 = vmatpush2.msra.mxu0 0.0
        %448 = vmatprep.subr.mxu0 0.0
        %449 = vmatpush2.msra.mxu0 0.0
        %450 = vmatprep.subr.mxu0 0.0
        %451 = vmatpush2.msra.mxu0 0.0
        %452 = vmatprep.subr.mxu0 0.0
        %453 = vmatpush2.msra.mxu0 0.0
        %454 = vmatprep.subr.mxu0 0.0
        %455 = vmatpush2.msra.mxu0 0.0
        %456 = vmatprep.subr.mxu0 0.0
        %457 = vmatpush2.msra.mxu0 0.0
        %458 = vmatprep.subr.mxu0 0.0
        %459 = vmatpush2.msra.mxu0 0.0
        %460 = vmatprep.subr.mxu0 0.0
        %461 = vmatpush2.msra.mxu0 0.0
        %462 = vmatprep.mubr.f32.mxu0 0.0
        %463 = vmatmul.mubr.f32.gmra.mxu0 %v380
        %v464 = vpop.f32.mrf.mxu0
        %v465 = vadd.f32 0.0, %v464
        %v466 = vpop.f32.mrf.mxu0
        %467 = vmatprep.mubr.f32.mxu0 0.0
        %468 = vmatmul.mubr.f32.gmra.mxu0 %v381
        %v469 = vpop.f32.mrf.mxu0
        %v470 = vadd.f32 0.0, %v469
        %v471 = vpop.f32.mrf.mxu0
        %472 = vdwg.mxu0
        %v473 = vld [vmem:[#allocation2] sm:$0xff]
        %v474 = vld [vmem:[#allocation2 + $0x8] sm:$0xff]
        %v475 = vld [vmem:[#allocation2 + $0x10] sm:$0xff]
        %v476 = vld [vmem:[#allocation2 + $0x18] sm:$0xff]
        %vm477 = vcmask 261120
        %v479 = vsel %vm477, %v465, 0
        %v482 = vsel %vm477, %v470, 0
        %484 = vmatprep.subr.mxu0 0.0
        %485 = vmatpush1.msra.mxu0 0.0
        %486 = vmatprep.subr.mxu0 0.0
        %487 = vmatpush1.msra.mxu0 0.0
        %488 = vmatprep.subr.mxu0 0.0
        %489 = vmatpush1.msra.mxu0 0.0
        %490 = vmatprep.subr.mxu0 0.0
        %491 = vmatpush1.msra.mxu0 0.0
        %492 = vmatprep.subr.mxu0 0.0
        %493 = vmatpush1.msra.mxu0 0.0
        %494 = vmatprep.subr.mxu0 0.0
        %495 = vmatpush1.msra.mxu0 0.0
        %496 = vmatprep.subr.mxu0 0.0
        %497 = vmatpush1.msra.mxu0 0.0
        %498 = vmatprep.subr.mxu0 0.0
        %499 = vmatpush1.msra.mxu0 0.0
        %500 = vmatprep.subr.mxu0 0.0
        %501 = vmatpush1.msra.mxu0 0.0
        %502 = vmatprep.subr.mxu0 0.0
        %503 = vmatpush1.msra.mxu0 0.0
        %504 = vmatprep.subr.mxu0 0.0
        %505 = vmatpush1.msra.mxu0 0.0
        %506 = vmatprep.subr.mxu0 0.0
        %507 = vmatpush1.msra.mxu0 0.0
        %508 = vmatprep.subr.mxu0 0.0
        %509 = vmatpush1.msra.mxu0 %v476
        %510 = vmatprep.subr.mxu0 0.0
        %511 = vmatpush1.msra.mxu0 %v475
        %512 = vmatprep.subr.mxu0 0.0
        %513 = vmatpush1.msra.mxu0 %v474
        %514 = vmatprep.subr.mxu0 0.0
        %515 = vmatpush1.msra.mxu0 %v473
        %516 = vmatprep.subr.mxu0 0.0
        %517 = vmatpush2.msra.mxu0 0.0
        %518 = vmatprep.subr.mxu0 0.0
        %519 = vmatpush2.msra.mxu0 0.0
        %520 = vmatprep.subr.mxu0 0.0
        %521 = vmatpush2.msra.mxu0 0.0
        %522 = vmatprep.subr.mxu0 0.0
        %523 = vmatpush2.msra.mxu0 0.0
        %524 = vmatprep.subr.mxu0 0.0
        %525 = vmatpush2.msra.mxu0 0.0
        %526 = vmatprep.subr.mxu0 0.0
        %527 = vmatpush2.msra.mxu0 0.0
        %528 = vmatprep.subr.mxu0 0.0
        %529 = vmatpush2.msra.mxu0 0.0
        %530 = vmatprep.subr.mxu0 0.0
        %531 = vmatpush2.msra.mxu0 0.0
        %532 = vmatprep.subr.mxu0 0.0
        %533 = vmatpush2.msra.mxu0 0.0
        %534 = vmatprep.subr.mxu0 0.0
        %535 = vmatpush2.msra.mxu0 0.0
        %536 = vmatprep.subr.mxu0 0.0
        %537 = vmatpush2.msra.mxu0 0.0
        %538 = vmatprep.subr.mxu0 0.0
        %539 = vmatpush2.msra.mxu0 0.0
        %540 = vmatprep.subr.mxu0 0.0
        %541 = vmatpush2.msra.mxu0 0.0
        %542 = vmatprep.subr.mxu0 0.0
        %543 = vmatpush2.msra.mxu0 0.0
        %544 = vmatprep.subr.mxu0 0.0
        %545 = vmatpush2.msra.mxu0 0.0
        %546 = vmatprep.subr.mxu0 0.0
        %547 = vmatpush2.msra.mxu0 0.0
        %548 = vmatprep.mubr.f32.mxu0 0.0
        %549 = vmatmul.mubr.f32.gmra.mxu0 %v479
        %v550 = vpop.f32.mrf.mxu0
        %v551 = vadd.f32 0.0, %v550
        %v552 = vpop.f32.mrf.mxu0
        %553 = vmatprep.mubr.f32.mxu0 0.0
        %554 = vmatmul.mubr.f32.gmra.mxu0 %v482
        %v555 = vpop.f32.mrf.mxu0
        %v556 = vadd.f32 0.0, %v555
        %v557 = vpop.f32.mrf.mxu0
        %558 = vdwg.mxu0
        %v559 = vlaneseq
        %v560 = vand.u32 %v559, 127
        %vm561 = vcmp.lt.s32.totalorder %v560, 16
        %v562 = vsel %vm561, %v551, -1e+30
        %v563 = vsel %vm561, %v556, -1e+30
        %564 = vmax.xlane.f32.xlu0 %v562
        %v565 = vpop.xlane.xlu0 %564
        %566 = vmax.xlane.f32.xlu0 %v563
        %v567 = vpop.xlane.xlu0 %566
        %v568 = vsub.f32 %v562, %v565
        %v569 = vsub.f32 %v563, %v567
        %v570 = vmul.f32 %v568, 1.442695
        %v571 = vpow.pop %v570
        %v572 = vmul.f32 %v569, 1.442695
        %v573 = vpow.pop %v572
        %574 = vadd.xlane.f32.xlu0 %v571
        %v575 = vpop.xlane.xlu0 %574
        %576 = vadd.xlane.f32.xlu0 %v573
        %v577 = vpop.xlane.xlu0 %576
        %v578 = vrcp.pop %v575
        %v579 = vrcp.pop %v577
        %v580 = vmul.f32 %v571, %v578
        %v581 = vmul.f32 %v573, %v579
        %582 = vst [vmem:[%s255] sm:$0xff] %v580
        %583 = vst [vmem:[%s255 + $0x8] sm:$0xff] %v581
        %s584 = sand.u32 %s139, 1
        %s585 = scalar_lea.sflag [#allocation5], %s584
        %s586 = sand.u32 %s139, 1
        %s587 = smul.addr %s586, 16
        %s588 = scalar_lea.vmem [#allocation6], %s587
        // Predicated region
        $region45: #{tpu_custom_call.1} parent=35 // pred_check
          %p589 = pneg %p149
        $region46: #{tpu_custom_call.1} parent=35 // pred_check_branch
          %591 = sbr.rel (%p589) target = $region48
        $region47: #{tpu_custom_call.1} parent=35 // pred_region
          %s592 = smul.u32 2, %s26
          %s594 = ssub.s32 256, 256
          %595 = vsyncadd %s585, %s594
          %s596 = smul.addr %s25, 2
          %s597 = sadd.s32 %s592, %s596
          %s598 = smul.addr %s597, 128
          %s599 = scalar_lea.hbm %s4, %s598
          %s600 = sshll.u32 %s588, 4
          %s601 = int_to_ptr.vmem [resolvable:$true] %s600
          %606 = dma.vmem_to_hbm [thread:$0]  %s601, 256, %s599, %s585, 128, 128, 8
        $region48: #{tpu_custom_call.1} parent=35 // pred_fallthru
          _
      $region36: #{tpu_custom_call.1} parent=5 // pred_fallthru
        _
      %p607 = scmp.le.s32.totalorder 2, %s16
      // Predicated region
      $region49: #{tpu_custom_call.1} parent=5 // pred_check
        %p608 = pneg %p607
      $region50: #{tpu_custom_call.1} parent=5 // pred_check_branch
        %610 = sbr.rel (%p608) target = $region52
      $region51: #{tpu_custom_call.1} parent=5 // pred_region
        %s611 = ssub.s32 %s16, 2
        // Predicated region
        $region53: #{tpu_custom_call.1} parent=51 // pred_check
          %p612 = pneg %p155
        $region54: #{tpu_custom_call.1} parent=51 // pred_check_branch
          %614 = sbr.rel (%p612) target = $region56
        $region55: #{tpu_custom_call.1} parent=51 // pred_region
          %s615 = sand.u32 %s140, 1
          %s616 = scalar_lea.sflag [#allocation5], %s615
          %s617 = sand.u32 %s140, 1
          %s618 = smul.addr %s617, 16
          %s619 = scalar_lea.vmem [#allocation6], %s618
          %620 = dma.done %s616, 256
        $region56: #{tpu_custom_call.1} parent=51 // pred_fallthru
          _
      $region52: #{tpu_custom_call.1} parent=5 // pred_fallthru
        _
    $region6: #{tpu_custom_call.1} parent=1 // loop_footer
      %s20 = sadd.s32 1, %s16
    $region7: #{tpu_custom_call.1} parent=1 // loop_footer_branch
      %15 = sbr.rel target = $region3
    $region8: #{tpu_custom_call.1} parent=1 // loop_exit
      _
    %621 = vsyncpa [#allocation4], 1
    %s622 = scalar_lea.sflag [#allocation4], 1
    %623 = vsyncpa %s622, 1
    %624 = vsyncpa [#allocation5], 1
    %s625 = scalar_lea.sflag [#allocation5], 1
    %626 = vsyncpa %s625, 1

</llo_original>
